<compile_context>
chip_gen: v7x
topology: tpu7x:2x2x1
jax: 0.10.0
libtpu: 0.0.40
codegen_flags: <defaults>
</compile_context>

<pallas_src>
import functools

import numpy as np
import jax
import jax.numpy as jnp
from jax import lax
from jax.experimental import pallas as pl
from jax.experimental.pallas import tpu as pltpu


def _vmem_limit_bytes():
    """Generation-aware VMEM limit (v7x has only 64 MiB physical per TC)."""
    try:
        cap = int(pltpu.get_tpu_info().vmem_capacity_bytes)
    except Exception:
        cap = 128 * 1024 * 1024
    return int(max(32 * 1024 * 1024, min(cap // 2, 64 * 1024 * 1024)))


_VMEM_LIMIT = _vmem_limit_bytes()


def _round_up(x, n):
    return ((x + n - 1) // n) * n


def _row_tile(m, max_tile=512):
    """Largest multiple-of-8 tile that divides m and is <= max_tile.

    If that yields a single grid step, halve it so the 'parallel' axis can be
    sharded across both TensorCores on v7x (v5e/v6e are single-TC; the extra
    grid step costs ~0.35 us)."""
    assert m % 8 == 0
    tm = min(m, max_tile)
    tm -= tm % 8
    while tm > 8 and m % tm != 0:
        tm -= 8
    tm = max(tm, 8)
    if tm == m and m >= 16 and (m // 2) % 8 == 0:
        tm = m // 2
    return tm


def _pad_rows(x, m_pad):
    m = x.shape[0]
    if m_pad == m:
        return x
    return jnp.pad(x, ((0, m_pad - m), (0, 0)))


# ----------------------------------------------------------------------------
# Pallas kernels
# ----------------------------------------------------------------------------
def _conv_block_kernel(prev_ref, cur_ref, wt_ref, wb_ref, b_ref, o_ref, *, leaky):
    """Causal strided Conv1d (kernel=2r, stride=r) as two MXU matmuls.

    y = act( prev_block @ W[taps 0..r-1] + cur_block @ W[taps r..2r-1] + b )
    bf16 MXU operands, f32 accumulation and f32 epilogue."""
    acc = jnp.dot(prev_ref[...], wt_ref[...], preferred_element_type=jnp.float32)
    acc = acc + jnp.dot(cur_ref[...], wb_ref[...], preferred_element_type=jnp.float32)
    acc = acc + b_ref[...].astype(jnp.float32)
    if leaky:
        acc = jnp.where(acc >= 0.0, acc, 0.2 * acc)
    o_ref[...] = acc.astype(o_ref.dtype)


def _mmd_kernel(xt_ref, xf_ref, yf_ref, o_ref, acc_ref, *, n_valid):
    """Fused MMD: k(x,x) + k(y,y) - 2 k(x,y), RBF kernel exp(-||a-b||^2 / d^2).

    Grid runs over row tiles of x; full x and y stay resident.  Cross terms use
    the MXU (a @ b^T), exp is exact (EUP), partial sums accumulate in SMEM."""
    i = pl.program_id(0)
    tm = xt_ref.shape[0]
    n_pad, d = xf_ref.shape
    inv_d2 = 1.0 / float(d * d)

    col_ids = lax.broadcasted_iota(jnp.int32, (1, n_pad), 1)
    col_mask = (col_ids < n_valid).astype(jnp.float32)                  # (1, n_pad)
    row_ids = lax.broadcasted_iota(jnp.int32, (tm, 1), 0) + i * tm
    row_mask = (row_ids < n_valid).astype(jnp.float32)                  # (tm, 1)
    full_row_ids = lax.broadcasted_iota(jnp.int32, (n_pad, 1), 0)
    full_row_mask = (full_row_ids < n_valid).astype(jnp.float32)        # (n_pad, 1)

    def pair_sum(a, b, mask_a, mask_b):
        # sum_{i,j} exp(-||a_i - b_j||^2 / d^2) over valid (i, j) pairs.
        a2 = jnp.sum(a * a, axis=1, keepdims=True)                      # (ma, 1)
        b2 = jnp.transpose(jnp.sum(b * b, axis=1, keepdims=True))       # (1, mb)
        cross = lax.dot_general(a, b, (((1,), (1,)), ((), ())),
                                preferred_element_type=jnp.float32)     # MXU
        d2 = a2 + b2 - 2.0 * cross
        return jnp.sum(jnp.exp(-d2 * inv_d2) * mask_a * mask_b)

    @pl.when(i == 0)
    def _():
        # k(y, y) only needs to be computed once (y is fully resident).
        acc_ref[0] = pair_sum(yf_ref[...], yf_ref[...], full_row_mask, col_mask)
        acc_ref[1] = 0.0
        acc_ref[2] = 0.0

    xt = xt_ref[...]
    acc_ref[1] = acc_ref[1] + pair_sum(xt, xf_ref[...], row_mask, col_mask)   # k(x,x)
    acc_ref[2] = acc_ref[2] + pair_sum(xt, yf_ref[...], row_mask, col_mask)   # k(x,y)

    @pl.when(i == pl.num_programs(0) - 1)
    def _():
        inv_n2 = 1.0 / float(n_valid * n_valid)
        mmd = (acc_ref[1] + acc_ref[0] - 2.0 * acc_ref[2]) * inv_n2
        o_ref[...] = jnp.full((1, 1), mmd, o_ref.dtype)


# ----------------------------------------------------------------------------
# pallas_call wrappers
# ----------------------------------------------------------------------------
def pallas_conv_block(prev, cur, w_top, w_bot, bias, *, leaky, out_dtype):
    m, k = cur.shape
    n = w_top.shape[1]
    m_pad = _round_up(m, 8)
    prev = _pad_rows(prev, m_pad)
    cur = _pad_rows(cur, m_pad)
    tm = _row_tile(m_pad)
    out = pl.pallas_call(
        functools.partial(_conv_block_kernel, leaky=leaky),
        out_shape=jax.ShapeDtypeStruct((m_pad, n), out_dtype),
        grid=(m_pad // tm,),
        in_specs=[
            pl.BlockSpec((tm, k), lambda i: (i, 0)),
            pl.BlockSpec((tm, k), lambda i: (i, 0)),
            pl.BlockSpec((k, n), lambda i: (0, 0)),   # constant: not re-fetched
            pl.BlockSpec((k, n), lambda i: (0, 0)),
            pl.BlockSpec((1, n), lambda i: (0, 0)),
        ],
        out_specs=pl.BlockSpec((tm, n), lambda i: (i, 0)),
        compiler_params=pltpu.CompilerParams(
            dimension_semantics=("parallel",),
            vmem_limit_bytes=_VMEM_LIMIT),
    )(prev, cur, w_top, w_bot, bias)
    return out[:m] if m_pad != m else out


def pallas_mmd(x, y):
    """MMD between the rows of x and the rows of y (both (N, D) float32)."""
    assert x.shape == y.shape
    n, d = x.shape
    n_pad = _round_up(n, 8)
    x = _pad_rows(x.astype(jnp.float32), n_pad)
    y = _pad_rows(y.astype(jnp.float32), n_pad)
    tm = _row_tile(n_pad, max_tile=256)
    out = pl.pallas_call(
        functools.partial(_mmd_kernel, n_valid=n),
        out_shape=jax.ShapeDtypeStruct((1, 1), jnp.float32),
        grid=(n_pad // tm,),
        in_specs=[
            pl.BlockSpec((tm, d), lambda i: (i, 0)),      # x tile
            pl.BlockSpec((n_pad, d), lambda i: (0, 0)),   # x full (resident)
            pl.BlockSpec((n_pad, d), lambda i: (0, 0)),   # y full (resident)
        ],
        out_specs=pl.BlockSpec((1, 1), lambda i: (0, 0)),
        scratch_shapes=[pltpu.SMEM((3,), jnp.float32)],
        compiler_params=pltpu.CompilerParams(
            dimension_semantics=("arbitrary",),           # reduction over x tiles
            vmem_limit_bytes=_VMEM_LIMIT),
    )(x, x, y)
    return out


# ----------------------------------------------------------------------------
# Modules
# ----------------------------------------------------------------------------
class PallasConvEncoder:
    """RAVE-style causal strided Conv1d stack (concrete stand-in for encoder_cls).

    Per ratio r: Conv1d(kernel=2r, stride=r, causal left pad r) + leaky ReLU(0.2)
    on all but the last layer; the last layer emits latent_size channels in f32."""
    # TODO(synk): weight_norm reparameterization of the torch convs is omitted
    #             (pure rescaling of the weights at init; no structural effect).

    def __init__(self, latent_size, hidden_size, ratios, n_channels=1, *, key,
                 mxu_dtype=jnp.bfloat16):
        self.ratios = tuple(int(r) for r in ratios)
        self.latent_size = latent_size
        self.mxu_dtype = mxu_dtype

        channels = [n_channels]
        channels.extend((len(self.ratios) - 1) * [hidden_size])
        channels.append(latent_size)

        self.w_top, self.w_bot, self.bias = [], [], []
        for i, r in enumerate(self.ratios):
            key, kw, kb = jax.random.split(key, 3)
            c_in, c_out, ksz = channels[i], channels[i + 1], 2 * r
            w = jax.random.normal(kw, (c_out, c_in, ksz), jnp.float32)
            w = w / np.sqrt(c_in * ksz)
            b = 0.01 * jax.random.normal(kb, (c_out,), jnp.float32)
            # (c_out, c_in, k) -> (k*c_in, c_out), rows ordered (k, c_in), c_in fastest
            w_flat = jnp.transpose(w, (2, 1, 0)).reshape(ksz * c_in, c_out)
            half = r * c_in
            self.w_top.append(w_flat[:half].astype(mxu_dtype))   # taps 0..r-1
            self.w_bot.append(w_flat[half:].astype(mxu_dtype))   # taps r..2r-1
            self.bias.append(b.reshape(1, c_out))                # f32 epilogue bias

    def __call__(self, x):
        B, _, L = x.shape
        dt = self.mxu_dtype
        # NCL -> channel-last rows once; all layers stay lane-dense (channel on lanes).
        h = jnp.transpose(x, (0, 2, 1)).astype(dt)               # (B, L, C)
        for i, r in enumerate(self.ratios):
            _, t_in, c = h.shape
            assert t_in % r == 0
            t_out = t_in // r
            # kernel=2r / stride=r frames are [block t-1 | block t]: build the two
            # halves as shifted views (no gather, no 2x duplicated frames array).
            blocked = h.reshape(B, t_out, r * c)
            prev = jnp.concatenate(
                [jnp.zeros_like(blocked[:, :1]), blocked[:, :-1]], axis=1)
            leaky = i != len(self.ratios) - 1
            out_dtype = dt if leaky else jnp.float32             # latent in f32
            rows = pallas_conv_block(
                prev.reshape(B * t_out, r * c),
                blocked.reshape(B * t_out, r * c),
                self.w_top[i], self.w_bot[i], self.bias[i],
                leaky=leaky, out_dtype=out_dtype)
            h = rows.reshape(B, t_out, -1)
        # Back to torch NCL layout — transpose only the small latent tensor.
        return jnp.transpose(h, (0, 2, 1))                       # (B, latent, T_down)


class WasserteinEncoder:
    """JAX/Pallas port of rave.blocks.WasserteinEncoder.

    forward(x) = encoder(x) (detached when warmed_up); reparametrize() adds the
    MMD regulariser against a standard normal and the optional noise channels."""
    # TODO(synk): `encoder_cls` is an injected constructor argument in the torch
    #             module; a RAVE-style causal strided conv stack is used here.

    def __init__(self, latent_size, hidden_size, ratios, noise_augmentation=0,
                 n_channels=1, *, key):
        self.encoder = PallasConvEncoder(latent_size, hidden_size, ratios,
                                         n_channels=n_channels, key=key)
        self.noise_augmentation = int(noise_augmentation)
        self.warmed_up = False

    def set_warmed_up(self, state):
        self.warmed_up = bool(state)

    def compute_mean_kernel(self, x, y):
        # Kept for API parity; the fused Pallas kernel in compute_mmd evaluates
        # all three mean-kernel terms in a single pass.
        d = x.shape[-1]
        k = jnp.mean((x[:, None] - y[None]) ** 2, axis=2) / d
        return jnp.mean(jnp.exp(-k))

    def compute_mmd(self, x, y):
        return pallas_mmd(x, y)[0, 0]

    def reparametrize(self, z, key):
        B, C, T = z.shape
        z_rows = jnp.transpose(z, (0, 2, 1)).reshape(-1, C).astype(jnp.float32)
        k_mmd, k_aug = jax.random.split(key)
        y = jax.random.normal(k_mmd, z_rows.shape, jnp.float32)   # torch.randn_like
        reg = self.compute_mmd(z_rows, y)
        if self.noise_augmentation:
            noise = jax.random.normal(
                k_aug, (B, self.noise_augmentation, T)).astype(z.dtype)
            z = jnp.concatenate([z, noise], axis=1)
        return z, reg

    def __call__(self, x):
        z = self.encoder(x)
        if self.warmed_up:
            z = lax.stop_gradient(z)                              # torch .detach()
        return z


# ----------------------------------------------------------------------------
if __name__ == "__main__":
    key = jax.random.PRNGKey(0)
    k_param, k_x, k_noise = jax.random.split(key, 3)

    B, n_channels, L = 2, 1, 64
    ratios = (2, 2, 2)                       # T_down = 8
    hidden_size, latent_size = 32, 16
    noise_augmentation = 2

    model = WasserteinEncoder(latent_size, hidden_size, ratios,
                              noise_augmentation=noise_augmentation,
                              n_channels=n_channels, key=k_param)

    x = jax.random.normal(k_x, (B, n_channels, L), jnp.float32)

    z = model(x)                              # forward pass (spec semantics)
    z = jax.block_until_ready(z)
    t_down = L // int(np.prod(ratios))
    assert z.shape == (B, latent_size, t_down), z.shape
    assert bool(jnp.all(jnp.isfinite(z)))

    z_aug, reg = model.reparametrize(z, k_noise)
    z_aug = jax.block_until_ready(z_aug)
    reg = jax.block_until_ready(reg)
    assert z_aug.shape == (B, latent_size + noise_augmentation, t_down), z_aug.shape
    assert bool(jnp.isfinite(reg))

    print("KERNEL_OK")
</pallas_src>

<mosaic_0001>
module attributes {stable_mosaic.version = 11 : i64} {
  func.func @_conv_block_kernel(%arg0: i32, %arg1: memref<32x2xbf16, #tpu.memory_space<vmem>>, %arg2: memref<32x2xbf16, #tpu.memory_space<vmem>>, %arg3: memref<2x32xbf16, #tpu.memory_space<vmem>>, %arg4: memref<2x32xbf16, #tpu.memory_space<vmem>>, %arg5: memref<1x32xf32, #tpu.memory_space<vmem>>, %arg6: memref<32x32xbf16, #tpu.memory_space<vmem>>) attributes {dimension_semantics = [#tpu.dimension_semantics<parallel>], iteration_bounds = array<i64: 2>, scalar_prefetch = 0 : i64, scratch_operands = 0 : i64, tpu.core_type = #tpu.core_type<tc>, window_params = [{transform_indices = @transform_0, window_bounds = array<i64: 32, 2>}, {transform_indices = @transform_1, window_bounds = array<i64: 32, 2>}, {pipeline_mode = #tpu.pipeline_mode<synchronous>, transform_indices = @transform_2, window_bounds = array<i64: 2, 32>}, {pipeline_mode = #tpu.pipeline_mode<synchronous>, transform_indices = @transform_3, window_bounds = array<i64: 2, 32>}, {pipeline_mode = #tpu.pipeline_mode<synchronous>, transform_indices = @transform_4, window_bounds = array<i64: 1, 32>}, {transform_indices = @transform_5, window_bounds = array<i64: 32, 32>}]} {
    %c0 = arith.constant 0 : index
    %c0_0 = arith.constant 0 : index
    %0 = vector.load %arg1[%c0, %c0_0] : memref<32x2xbf16, #tpu.memory_space<vmem>>, vector<32x2xbf16>
    %c0_1 = arith.constant 0 : index
    %c0_2 = arith.constant 0 : index
    %1 = vector.load %arg3[%c0_1, %c0_2] : memref<2x32xbf16, #tpu.memory_space<vmem>>, vector<2x32xbf16>
    %cst = arith.constant dense<0.000000e+00> : vector<32x32xf32>
    %2 = tpu.matmul %0, %1, %cst {dimension_numbers = #tpu.dot_dimension_numbers<[1], [0], [0], [1], [0, 0, 1, 1], [], []>} : vector<32x2xbf16>, vector<2x32xbf16>, vector<32x32xf32> -> vector<32x32xf32>
    %c0_3 = arith.constant 0 : index
    %c0_4 = arith.constant 0 : index
    %3 = vector.load %arg2[%c0_3, %c0_4] : memref<32x2xbf16, #tpu.memory_space<vmem>>, vector<32x2xbf16>
    %c0_5 = arith.constant 0 : index
    %c0_6 = arith.constant 0 : index
    %4 = vector.load %arg4[%c0_5, %c0_6] : memref<2x32xbf16, #tpu.memory_space<vmem>>, vector<2x32xbf16>
    %cst_7 = arith.constant dense<0.000000e+00> : vector<32x32xf32>
    %5 = tpu.matmul %3, %4, %cst_7 {dimension_numbers = #tpu.dot_dimension_numbers<[1], [0], [0], [1], [0, 0, 1, 1], [], []>} : vector<32x2xbf16>, vector<2x32xbf16>, vector<32x32xf32> -> vector<32x32xf32>
    %6 = arith.addf %2, %5 : vector<32x32xf32>
    %c0_8 = arith.constant 0 : index
    %c0_9 = arith.constant 0 : index
    %7 = vector.load %arg5[%c0_8, %c0_9] : memref<1x32xf32, #tpu.memory_space<vmem>>, vector<1x32xf32>
    %8 = vector.broadcast %7 : vector<1x32xf32> to vector<32x32xf32>
    %9 = arith.addf %6, %8 : vector<32x32xf32>
    %cst_10 = arith.constant 0.000000e+00 : f32
    %10 = vector.broadcast %cst_10 : f32 to vector<32x32xf32>
    %11 = arith.cmpf oge, %9, %10 : vector<32x32xf32>
    %cst_11 = arith.constant 2.000000e-01 : f32
    %12 = vector.broadcast %cst_11 : f32 to vector<32x32xf32>
    %13 = arith.mulf %12, %9 : vector<32x32xf32>
    %14 = arith.select %11, %9, %13 : vector<32x32xi1>, vector<32x32xf32>
    %15 = arith.truncf %14 : vector<32x32xf32> to vector<32x32xbf16>
    %c0_12 = arith.constant 0 : index
    %c0_13 = arith.constant 0 : index
    %16 = vector.load %arg6[%c0_12, %c0_13] : memref<32x32xbf16, #tpu.memory_space<vmem>>, vector<32x32xbf16>
    tpu.vector_store %arg6[%c0_12, %c0_13], %15 {strides = array<i32>} : memref<32x32xbf16, #tpu.memory_space<vmem>>, vector<32x32xbf16>,
    return
  }
  func.func @transform_0(%arg0: i32) -> (i32, i32) {
    %c0_i32 = arith.constant 0 : i32
    %c0_i32_0 = arith.constant 0 : i32
    return %arg0, %c0_i32 : i32, i32
  }
  func.func @transform_1(%arg0: i32) -> (i32, i32) {
    %c0_i32 = arith.constant 0 : i32
    %c0_i32_0 = arith.constant 0 : i32
    return %arg0, %c0_i32 : i32, i32
  }
  func.func @transform_2(%arg0: i32) -> (i32, i32) {
    %c0_i32 = arith.constant 0 : i32
    %c0_i32_0 = arith.constant 0 : i32
    %c0_i32_1 = arith.constant 0 : i32
    return %c0_i32, %c0_i32_0 : i32, i32
  }
  func.func @transform_3(%arg0: i32) -> (i32, i32) {
    %c0_i32 = arith.constant 0 : i32
    %c0_i32_0 = arith.constant 0 : i32
    %c0_i32_1 = arith.constant 0 : i32
    return %c0_i32, %c0_i32_0 : i32, i32
  }
  func.func @transform_4(%arg0: i32) -> (i32, i32) {
    %c0_i32 = arith.constant 0 : i32
    %c0_i32_0 = arith.constant 0 : i32
    %c0_i32_1 = arith.constant 0 : i32
    return %c0_i32, %c0_i32_0 : i32, i32
  }
  func.func @transform_5(%arg0: i32) -> (i32, i32) {
    %c0_i32 = arith.constant 0 : i32
    %c0_i32_0 = arith.constant 0 : i32
    return %arg0, %c0_i32 : i32, i32
  }
}

</mosaic_0001>

<llo_original>
// kernel: tpu_custom_call.1
$region0: #{tpu_custom_call.1}
  #allocation0 [shape = 'u32[]', space=smem, size = 0x4, offset = 0x4, fixed_abs, tag = 'smem constant byte address 0x4 - core index']
  #allocation1 [shape = 'u32[144,128]{1,0:T(1,128)}', space=vmem, size = 0x12000, scoped, tag = 'internal scratch']
  %s0 = inlined_call_operand.hbm [shape: bf16[64,2], index: 0, kind: input, shape index: {}]
  %s1 = inlined_call_operand.hbm [shape: bf16[64,2], index: 1, kind: input, shape index: {}]
  %s2 = inlined_call_operand.hbm [shape: bf16[2,32], index: 2, kind: input, shape index: {}]
  %s3 = inlined_call_operand.hbm [shape: bf16[2,32], index: 3, kind: input, shape index: {}]
  %s4 = inlined_call_operand.hbm [shape: f32[1,32], index: 4, kind: input, shape index: {}]
  %s5 = inlined_call_operand.hbm [shape: bf16[64,32], index: 5, kind: output, shape index: {}]
  %s6 = sld [smem:[#allocation0]]
  $region73: #{tpu_custom_call.1} parent=0
    _
  %s8 = ssub.s32 1, %s6
  %s9 = scalar_select 0, %s8, %s6
  $region1: #{tpu_custom_call.1} parent=0
    #allocation2 [shape = 'u8[16384]{0}', space=vmem, size = 0x4000, scoped, tag = 'input window, operand 0']
    #allocation3 [shape = 's32[2]{0}', space=sflag, size = 0x8, scoped, tag = 'scoped memory for tpu_custom_call.1']
    #allocation4 [shape = 's32[2]{0}', space=sflag, size = 0x8, scoped, tag = 'scoped memory for tpu_custom_call.1']
    #allocation5 [shape = 'u8[16384]{0}', space=vmem, size = 0x4000, scoped, tag = 'input window, operand 1']
    #allocation6 [shape = 's32[2]{0}', space=sflag, size = 0x8, scoped, tag = 'scoped memory for tpu_custom_call.1']
    #allocation7 [shape = 'u8[512]{0}', space=vmem, size = 0x400, scoped, tag = 'input window, operand 2, single buffered']
    #allocation8 [shape = 'u8[512]{0}', space=vmem, size = 0x400, scoped, tag = 'input window, operand 3, single buffered']
    #allocation9 [shape = 's32[1]{0}', space=sflag, size = 0x4, scoped, tag = 'scoped memory for tpu_custom_call.1']
    #allocation10 [shape = 'u8[512]{0}', space=vmem, size = 0x400, scoped, tag = 'input window, operand 4, single buffered']
    #allocation11 [shape = 'u8[16384]{0}', space=vmem, size = 0x4000, scoped, tag = 'output window, operand 0']
    %10 = vsyncpa [#allocation3], 0
    %s11 = scalar_lea.sflag [#allocation3], 1
    %12 = vsyncpa %s11, 0
    %13 = vsyncpa [#allocation6], 0
    %s14 = scalar_lea.sflag [#allocation6], 1
    %15 = vsyncpa %s14, 0
    %16 = vsyncpa [#allocation9], 0
    %17 = vsyncpa [#allocation4], 0
    %s18 = scalar_lea.sflag [#allocation4], 1
    %19 = vsyncpa %s18, 0
    loop: start=0, step=1, limit=4
    $region2: #{tpu_custom_call.1} parent=1 // loop_pre_header
      _
    $region3: #{tpu_custom_call.1} parent=1 // loop_header
      %s21 = sphi 0, %s25
      %p22 = scmp.ge.s32.totalorder %s21, 4
      %s31 = sphi 0, %s33
      %s34 = sphi 0, %s31
      %s35 = sphi 0, %s34
      %s51 = sphi 0, %s35
      %s57 = sphi 0, %s59
      %s60 = sphi 0, %s57
      %s61 = sphi 0, %s60
      %s77 = sphi 0, %s61
      %s81 = sphi 0, %s81
      %s83 = sphi 0, %s81
      %s84 = sphi 0, %s83
      %s98 = sphi 0, %s84
      %s102 = sphi 0, %s102
      %s104 = sphi 0, %s102
      %s105 = sphi 0, %s104
      %s119 = sphi 0, %s105
      %s123 = sphi 0, %s123
      %s125 = sphi 0, %s123
      %s126 = sphi 0, %s125
      %s140 = sphi 0, %s126
      %s146 = sphi 0, %s148
      %s149 = sphi 0, %s146
      %s150 = sphi 0, %s149
      %s166 = sphi 0, %s150
    $region4: #{tpu_custom_call.1} parent=1 // loop_header_branch
      %24 = sbr.rel (%p22) target = $region8
    $region5: #{tpu_custom_call.1} parent=1 // loop_body
      %s26 = ssub.s32 %s21, 1
      %s27 = ssub.s32 %s21, 2
      %s28 = sadd.s32 %s21, 1
      %s29 = ssub.s32 %s21, %s28
      %p30 = scmp.eq.s32.totalorder %s29, 0
      %s32 = sadd.s32 %s31, 1
      %s33 = scalar_select %p30, %s31, %s32
      %p36 = pneg %p30
      %p37 = scmp.eq.s32.totalorder %s21, 1
      %p38 = por %p36, %p37
      %p39 = scmp.ne.s32.totalorder %s31, %s34
      %p40 = scmp.eq.s32.totalorder %s21, 0
      %p41 = por %p39, %p40
      %p42 = scmp.ne.s32.totalorder %s31, %s34
      %p43 = scmp.eq.s32.totalorder %s26, 1
      %p44 = por %p42, %p43
      %p45 = scmp.ne.s32.totalorder %s34, %s35
      %p46 = scmp.eq.s32.totalorder %s26, 0
      %p47 = por %p45, %p46
      %p48 = scmp.ne.s32.totalorder %s34, %s35
      %p49 = scmp.eq.s32.totalorder %s27, 1
      %p50 = por %p48, %p49
      %p52 = scmp.ne.s32.totalorder %s35, %s51
      %p53 = scmp.eq.s32.totalorder %s27, 0
      %p54 = por %p52, %p53
      %s55 = ssub.s32 %s21, %s28
      %p56 = scmp.eq.s32.totalorder %s55, 0
      %s58 = sadd.s32 %s57, 1
      %s59 = scalar_select %p56, %s57, %s58
      %p62 = pneg %p56
      %p63 = scmp.eq.s32.totalorder %s21, 1
      %p64 = por %p62, %p63
      %p65 = scmp.ne.s32.totalorder %s57, %s60
      %p66 = scmp.eq.s32.totalorder %s21, 0
      %p67 = por %p65, %p66
      %p68 = scmp.ne.s32.totalorder %s57, %s60
      %p69 = scmp.eq.s32.totalorder %s26, 1
      %p70 = por %p68, %p69
      %p71 = scmp.ne.s32.totalorder %s60, %s61
      %p72 = scmp.eq.s32.totalorder %s26, 0
      %p73 = por %p71, %p72
      %p74 = scmp.ne.s32.totalorder %s60, %s61
      %p75 = scmp.eq.s32.totalorder %s27, 1
      %p76 = por %p74, %p75
      %p78 = scmp.ne.s32.totalorder %s61, %s77
      %p79 = scmp.eq.s32.totalorder %s27, 0
      %p80 = por %p78, %p79
      %s82 = sadd.s32 %s81, 1
      %p85 = scmp.eq.s32.totalorder %s21, 1
      %p86 = scmp.ne.s32.totalorder %s81, %s83
      %p87 = scmp.eq.s32.totalorder %s21, 0
      %p88 = por %p86, %p87
      %p89 = scmp.ne.s32.totalorder %s81, %s83
      %p90 = scmp.eq.s32.totalorder %s26, 1
      %p91 = por %p89, %p90
      %p92 = scmp.ne.s32.totalorder %s83, %s84
      %p93 = scmp.eq.s32.totalorder %s26, 0
      %p94 = por %p92, %p93
      %p95 = scmp.ne.s32.totalorder %s83, %s84
      %p96 = scmp.eq.s32.totalorder %s27, 1
      %p97 = por %p95, %p96
      %p99 = scmp.ne.s32.totalorder %s84, %s98
      %p100 = scmp.eq.s32.totalorder %s27, 0
      %p101 = por %p99, %p100
      %s103 = sadd.s32 %s102, 1
      %p106 = scmp.eq.s32.totalorder %s21, 1
      %p107 = scmp.ne.s32.totalorder %s102, %s104
      %p108 = scmp.eq.s32.totalorder %s21, 0
      %p109 = por %p107, %p108
      %p110 = scmp.ne.s32.totalorder %s102, %s104
      %p111 = scmp.eq.s32.totalorder %s26, 1
      %p112 = por %p110, %p111
      %p113 = scmp.ne.s32.totalorder %s104, %s105
      %p114 = scmp.eq.s32.totalorder %s26, 0
      %p115 = por %p113, %p114
      %p116 = scmp.ne.s32.totalorder %s104, %s105
      %p117 = scmp.eq.s32.totalorder %s27, 1
      %p118 = por %p116, %p117
      %p120 = scmp.ne.s32.totalorder %s105, %s119
      %p121 = scmp.eq.s32.totalorder %s27, 0
      %p122 = por %p120, %p121
      %s124 = sadd.s32 %s123, 1
      %p127 = scmp.eq.s32.totalorder %s21, 1
      %p128 = scmp.ne.s32.totalorder %s123, %s125
      %p129 = scmp.eq.s32.totalorder %s21, 0
      %p130 = por %p128, %p129
      %p131 = scmp.ne.s32.totalorder %s123, %s125
      %p132 = scmp.eq.s32.totalorder %s26, 1
      %p133 = por %p131, %p132
      %p134 = scmp.ne.s32.totalorder %s125, %s126
      %p135 = scmp.eq.s32.totalorder %s26, 0
      %p136 = por %p134, %p135
      %p137 = scmp.ne.s32.totalorder %s125, %s126
      %p138 = scmp.eq.s32.totalorder %s27, 1
      %p139 = por %p137, %p138
      %p141 = scmp.ne.s32.totalorder %s126, %s140
      %p142 = scmp.eq.s32.totalorder %s27, 0
      %p143 = por %p141, %p142
      %s144 = ssub.s32 %s21, %s28
      %p145 = scmp.eq.s32.totalorder %s144, 0
      %s147 = sadd.s32 %s146, 1
      %s148 = scalar_select %p145, %s146, %s147
      %p151 = pneg %p145
      %p152 = scmp.eq.s32.totalorder %s21, 1
      %p153 = por %p151, %p152
      %p154 = scmp.ne.s32.totalorder %s146, %s149
      %p155 = scmp.eq.s32.totalorder %s21, 0
      %p156 = por %p154, %p155
      %p157 = scmp.ne.s32.totalorder %s146, %s149
      %p158 = scmp.eq.s32.totalorder %s26, 1
      %p159 = por %p157, %p158
      %p160 = scmp.ne.s32.totalorder %s149, %s150
      %p161 = scmp.eq.s32.totalorder %s26, 0
      %p162 = por %p160, %p161
      %p163 = scmp.ne.s32.totalorder %s149, %s150
      %p164 = scmp.eq.s32.totalorder %s27, 1
      %p165 = por %p163, %p164
      %p167 = scmp.ne.s32.totalorder %s150, %s166
      %p168 = scmp.eq.s32.totalorder %s27, 0
      %p169 = por %p167, %p168
      %p170 = scmp.le.s32.totalorder 1, %s21
      %p171 = scmp.lt.s32.totalorder %s21, 3
      %p172 = pnand %p170, %p171
      %p173 = pneg %p172
      // Predicated region
      $region9: #{tpu_custom_call.1} parent=5 // pred_check
        _
      $region10: #{tpu_custom_call.1} parent=5 // pred_check_branch
        %175 = sbr.rel (%p172) target = $region12
      $region11: #{tpu_custom_call.1} parent=5 // pred_region
        %s176 = ssub.s32 %s21, 1
        // Predicated region
        $region13: #{tpu_custom_call.1} parent=11 // pred_check
          %p177 = pneg %p94
        $region14: #{tpu_custom_call.1} parent=11 // pred_check_branch
          %179 = sbr.rel (%p177) target = $region16
        $region15: #{tpu_custom_call.1} parent=11 // pred_region
          %s181 = ssub.s32 16, 16
          %182 = vsyncadd [#allocation6], %s181
          %s184 = sshll.u32 [#allocation7], 4
          %s185 = int_to_ptr.vmem [resolvable:$true] %s184
          %187 = dma.hbm_to_vmem [thread:$0]  %s2, 16, %s185, [#allocation6]
        $region16: #{tpu_custom_call.1} parent=11 // pred_fallthru
          _
        // Predicated region
        $region17: #{tpu_custom_call.1} parent=11 // pred_check
          %p188 = pneg %p115
        $region18: #{tpu_custom_call.1} parent=11 // pred_check_branch
          %190 = sbr.rel (%p188) target = $region20
        $region19: #{tpu_custom_call.1} parent=11 // pred_region
          %s192 = ssub.s32 16, 16
          %193 = vsyncadd [#allocation9], %s192
          %s195 = sshll.u32 [#allocation8], 4
          %s196 = int_to_ptr.vmem [resolvable:$true] %s195
          %198 = dma.hbm_to_vmem [thread:$0]  %s3, 16, %s196, [#allocation9]
        $region20: #{tpu_custom_call.1} parent=11 // pred_fallthru
          _
        // Predicated region
        $region21: #{tpu_custom_call.1} parent=11 // pred_check
          %p199 = pneg %p136
        $region22: #{tpu_custom_call.1} parent=11 // pred_check_branch
          %201 = sbr.rel (%p199) target = $region24
        $region23: #{tpu_custom_call.1} parent=11 // pred_region
          %s203 = ssub.s32 16, 16
          %204 = vsyncadd [#allocation9], %s203
          %s206 = sshll.u32 [#allocation10], 4
          %s207 = int_to_ptr.vmem [resolvable:$true] %s206
          %209 = dma.hbm_to_vmem [thread:$0]  %s4, 16, %s207, [#allocation9]
        $region24: #{tpu_custom_call.1} parent=11 // pred_fallthru
          _
      $region12: #{tpu_custom_call.1} parent=5 // pred_fallthru
        _
      %p210 = scmp.lt.s32.totalorder %s21, 2
      // Predicated region
      $region25: #{tpu_custom_call.1} parent=5 // pred_check
        %p211 = pneg %p210
      $region26: #{tpu_custom_call.1} parent=5 // pred_check_branch
        %213 = sbr.rel (%p211) target = $region28
      $region27: #{tpu_custom_call.1} parent=5 // pred_region
        // Predicated region
        $region29: #{tpu_custom_call.1} parent=27 // pred_check
          %p214 = pneg %p41
        $region30: #{tpu_custom_call.1} parent=27 // pred_check_branch
          %216 = sbr.rel (%p214) target = $region32
        $region31: #{tpu_custom_call.1} parent=27 // pred_region
          %s217 = sand.u32 %s31, 1
          %s218 = scalar_lea.sflag [#allocation3], %s217
          %s219 = sand.u32 %s31, 1
          %s220 = smul.addr %s219, 16
          %s221 = scalar_lea.vmem [#allocation2], %s220
          %s222 = smul.u32 4, %s21
          %s224 = ssub.s32 256, 256
          %225 = vsyncadd %s218, %s224
          %s226 = smul.addr %s222, 64
          %s227 = scalar_lea.hbm %s0, %s226
          %s228 = sshll.u32 %s221, 4
          %s229 = int_to_ptr.vmem [resolvable:$true] %s228
          %234 = dma.hbm_to_vmem [thread:$0]  %s227, 256, %s229, %s218, 64, 64, 4
        $region32: #{tpu_custom_call.1} parent=27 // pred_fallthru
          _
        // Predicated region
        $region33: #{tpu_custom_call.1} parent=27 // pred_check
          %p235 = pneg %p67
        $region34: #{tpu_custom_call.1} parent=27 // pred_check_branch
          %237 = sbr.rel (%p235) target = $region36
        $region35: #{tpu_custom_call.1} parent=27 // pred_region
          %s238 = sand.u32 %s21, 1
          %s239 = scalar_lea.sflag [#allocation6], %s238
          %s240 = sand.u32 %s57, 1
          %s241 = smul.addr %s240, 16
          %s242 = scalar_lea.vmem [#allocation5], %s241
          %s243 = smul.u32 4, %s21
          %s245 = ssub.s32 256, 256
          %246 = vsyncadd %s239, %s245
          %s247 = smul.addr %s243, 64
          %s248 = scalar_lea.hbm %s1, %s247
          %s249 = sshll.u32 %s242, 4
          %s250 = int_to_ptr.vmem [resolvable:$true] %s249
          %255 = dma.hbm_to_vmem [thread:$0]  %s248, 256, %s250, %s239, 64, 64, 4
        $region36: #{tpu_custom_call.1} parent=27 // pred_fallthru
          _
      $region28: #{tpu_custom_call.1} parent=5 // pred_fallthru
        _
      %p256 = scmp.le.s32.totalorder 1, %s21
      %p257 = scmp.lt.s32.totalorder %s21, 3
      %p258 = pnand %p256, %p257
      %p259 = pneg %p258
      // Predicated region
      $region37: #{tpu_custom_call.1} parent=5 // pred_check
        _
      $region38: #{tpu_custom_call.1} parent=5 // pred_check_branch
        %261 = sbr.rel (%p258) target = $region40
      $region39: #{tpu_custom_call.1} parent=5 // pred_region
        %s262 = ssub.s32 %s21, 1
        %s263 = sand.u32 %s34, 1
        %s264 = scalar_lea.sflag [#allocation3], %s263
        %s265 = sand.u32 %s34, 1
        %s266 = smul.addr %s265, 16
        %s267 = scalar_lea.vmem [#allocation2], %s266
        // Predicated region
        $region41: #{tpu_custom_call.1} parent=39 // pred_check
          %p268 = pneg %p47
        $region42: #{tpu_custom_call.1} parent=39 // pred_check_branch
          %270 = sbr.rel (%p268) target = $region44
        $region43: #{tpu_custom_call.1} parent=39 // pred_region
          %271 = dma.done %s264, 256
        $region44: #{tpu_custom_call.1} parent=39 // pred_fallthru
          _
        %s272 = sand.u32 %s26, 1
        %s273 = scalar_lea.sflag [#allocation6], %s272
        %s274 = sand.u32 %s60, 1
        %s275 = smul.addr %s274, 16
        %s276 = scalar_lea.vmem [#allocation5], %s275
        // Predicated region
        $region45: #{tpu_custom_call.1} parent=39 // pred_check
          %p277 = pneg %p73
        $region46: #{tpu_custom_call.1} parent=39 // pred_check_branch
          %279 = sbr.rel (%p277) target = $region48
        $region47: #{tpu_custom_call.1} parent=39 // pred_region
          %280 = dma.done %s273, 256
        $region48: #{tpu_custom_call.1} parent=39 // pred_fallthru
          _
        // Predicated region
        $region49: #{tpu_custom_call.1} parent=39 // pred_check
          %p281 = pneg %p94
        $region50: #{tpu_custom_call.1} parent=39 // pred_check_branch
          %283 = sbr.rel (%p281) target = $region52
        $region51: #{tpu_custom_call.1} parent=39 // pred_region
          %284 = dma.done [#allocation6], 16
        $region52: #{tpu_custom_call.1} parent=39 // pred_fallthru
          _
        // Predicated region
        $region53: #{tpu_custom_call.1} parent=39 // pred_check
          %p285 = pneg %p115
        $region54: #{tpu_custom_call.1} parent=39 // pred_check_branch
          %287 = sbr.rel (%p285) target = $region56
        $region55: #{tpu_custom_call.1} parent=39 // pred_region
          %288 = dma.done [#allocation9], 16
        $region56: #{tpu_custom_call.1} parent=39 // pred_fallthru
          _
        // Predicated region
        $region57: #{tpu_custom_call.1} parent=39 // pred_check
          %p289 = pneg %p136
        $region58: #{tpu_custom_call.1} parent=39 // pred_check_branch
          %291 = sbr.rel (%p289) target = $region60
        $region59: #{tpu_custom_call.1} parent=39 // pred_region
          %292 = dma.done [#allocation9], 16
        $region60: #{tpu_custom_call.1} parent=39 // pred_fallthru
          _
        %s293 = sand.u32 %s34, 1
        %s294 = scalar_lea.sflag [#allocation3], %s293
        %s295 = sand.u32 %s34, 1
        %s296 = smul.addr %s295, 16
        %s297 = scalar_lea.vmem [#allocation2], %s296
        %p298 = pneg %p47
        %p299 = pneg %p44
        %s300 = sand.u32 %s26, 1
        %s301 = scalar_lea.sflag [#allocation6], %s300
        %s302 = sand.u32 %s60, 1
        %s303 = smul.addr %s302, 16
        %s304 = scalar_lea.vmem [#allocation5], %s303
        %p305 = pneg %p73
        %p306 = pneg %p70
        %p307 = pneg %p94
        %p308 = pneg %p91
        %p309 = pneg %p115
        %p310 = pneg %p112
        %p311 = pneg %p136
        %p312 = pneg %p133
        %p313 = pneg %p162
        %p314 = pneg %p159
        %s315 = sand.u32 %s149, 1
        %s316 = scalar_lea.sflag [#allocation4], %s315
        %s317 = sand.u32 %s149, 1
        %s318 = smul.addr %s317, 16
        %s319 = scalar_lea.vmem [#allocation11], %s318
        %s320 = smul.u32 4, %s26
        %s321 = smul.u32 4, %s26
        %s322 = smul.u32 4, %s26
        %v324 = vld [vmem:[%s267] sm:$0xf]
        %v325 = vld [vmem:[%s267 + $0x4] sm:$0xf]
        %v326 = vld [vmem:[%s267 + $0x8] sm:$0xf]
        %v327 = vld [vmem:[%s267 + $0xc] sm:$0xf]
        %v328 = vld [vmem:[#allocation7] sm:$0x1]
        %v329 = vld [vmem:[%s276] sm:$0xf]
        %v330 = vld [vmem:[%s276 + $0x4] sm:$0xf]
        %v331 = vld [vmem:[%s276 + $0x8] sm:$0xf]
        %v332 = vld [vmem:[%s276 + $0xc] sm:$0xf]
        %v333 = vld [vmem:[#allocation8] sm:$0x1]
        %v338 = vunpack.c.l.b16 %v329
        %v339 = vunpack.c.l.b16 %v330
        %v340 = vunpack.c.l.b16 %v331
        %v341 = vunpack.c.l.b16 %v332
        %v342 = vpack.c.b16 %v339, %v338
        %v343 = vpack.c.b16 %v341, %v340
        %vm344 = vcmask 15360
        %v346 = vsel %vm344, %v342, 0
        %v349 = vsel %vm344, %v343, 0
        %vm351 = vcmask 1040384
        %v353 = vsel %vm351, %v333, 0
        %355 = vmatprep.subr.bf16.mxu0 0
        %356 = vmatpush1.bf16.msra.mxu0 %v353
        %357 = vmatprep.subr.bf16.mxu0 0
        %358 = vmatpush1.bf16.msra.mxu0 0
        %359 = vmatprep.subr.bf16.mxu0 0
        %360 = vmatpush1.bf16.msra.mxu0 0
        %361 = vmatprep.subr.bf16.mxu0 0
        %362 = vmatpush1.bf16.msra.mxu0 0
        %363 = vmatprep.subr.bf16.mxu0 0
        %364 = vmatpush1.bf16.msra.mxu0 0
        %365 = vmatprep.subr.bf16.mxu0 0
        %366 = vmatpush1.bf16.msra.mxu0 0
        %367 = vmatprep.subr.bf16.mxu0 0
        %368 = vmatpush1.bf16.msra.mxu0 0
        %369 = vmatprep.subr.bf16.mxu0 0
        %370 = vmatpush1.bf16.msra.mxu0 0
        %371 = vmatprep.subr.bf16.mxu0 0
        %372 = vmatpush1.bf16.msra.mxu0 0
        %373 = vmatprep.subr.bf16.mxu0 0
        %374 = vmatpush1.bf16.msra.mxu0 0
        %375 = vmatprep.subr.bf16.mxu0 0
        %376 = vmatpush1.bf16.msra.mxu0 0
        %377 = vmatprep.subr.bf16.mxu0 0
        %378 = vmatpush1.bf16.msra.mxu0 0
        %379 = vmatprep.subr.bf16.mxu0 0
        %380 = vmatpush1.bf16.msra.mxu0 0
        %381 = vmatprep.subr.bf16.mxu0 0
        %382 = vmatpush1.bf16.msra.mxu0 0
        %383 = vmatprep.subr.bf16.mxu0 0
        %384 = vmatpush1.bf16.msra.mxu0 0
        %385 = vmatprep.subr.bf16.mxu0 0
        %386 = vmatpush1.bf16.msra.mxu0 0
        %387 = vmatprep.mubr.bf16.mxu0 0
        %388 = vmatmul.mubr.bf16.gmra.mrb[0].mxu0 %v346
        %v389 = vpop.f32.mrb[0].mxu0
        %v390 = vadd.f32 0.0, %v389
        %v391 = vpop.f32.mrb[0].mxu0
        %v392 = vpop.f32.mrb[0].mxu0
        %v393 = vadd.f32 0.0, %v392
        %v394 = vpop.f32.mrb[0].mxu0
        %395 = vmatprep.mubr.bf16.mxu0 0
        %396 = vmatmul.mubr.bf16.gmra.mrb[0].mxu0 %v349
        %v397 = vpop.f32.mrb[0].mxu0
        %v398 = vadd.f32 0.0, %v397
        %v399 = vpop.f32.mrb[0].mxu0
        %v400 = vpop.f32.mrb[0].mxu0
        %v401 = vadd.f32 0.0, %v400
        %v402 = vpop.f32.mrb[0].mxu0
        %403 = vdwg.mxu0
        %v408 = vunpack.c.l.b16 %v324
        %v409 = vunpack.c.l.b16 %v325
        %v410 = vunpack.c.l.b16 %v326
        %v411 = vunpack.c.l.b16 %v327
        %v412 = vpack.c.b16 %v409, %v408
        %v413 = vpack.c.b16 %v411, %v410
        %v415 = vsel %vm344, %v412, 0
        %v418 = vsel %vm344, %v413, 0
        %v421 = vsel %vm351, %v328, 0
        %423 = vmatprep.subr.bf16.mxu0 0
        %424 = vmatpush1.bf16.msra.mxu0 %v421
        %425 = vmatprep.subr.bf16.mxu0 0
        %426 = vmatpush1.bf16.msra.mxu0 0
        %427 = vmatprep.subr.bf16.mxu0 0
        %428 = vmatpush1.bf16.msra.mxu0 0
        %429 = vmatprep.subr.bf16.mxu0 0
        %430 = vmatpush1.bf16.msra.mxu0 0
        %431 = vmatprep.subr.bf16.mxu0 0
        %432 = vmatpush1.bf16.msra.mxu0 0
        %433 = vmatprep.subr.bf16.mxu0 0
        %434 = vmatpush1.bf16.msra.mxu0 0
        %435 = vmatprep.subr.bf16.mxu0 0
        %436 = vmatpush1.bf16.msra.mxu0 0
        %437 = vmatprep.subr.bf16.mxu0 0
        %438 = vmatpush1.bf16.msra.mxu0 0
        %439 = vmatprep.subr.bf16.mxu0 0
        %440 = vmatpush1.bf16.msra.mxu0 0
        %441 = vmatprep.subr.bf16.mxu0 0
        %442 = vmatpush1.bf16.msra.mxu0 0
        %443 = vmatprep.subr.bf16.mxu0 0
        %444 = vmatpush1.bf16.msra.mxu0 0
        %445 = vmatprep.subr.bf16.mxu0 0
        %446 = vmatpush1.bf16.msra.mxu0 0
        %447 = vmatprep.subr.bf16.mxu0 0
        %448 = vmatpush1.bf16.msra.mxu0 0
        %449 = vmatprep.subr.bf16.mxu0 0
        %450 = vmatpush1.bf16.msra.mxu0 0
        %451 = vmatprep.subr.bf16.mxu0 0
        %452 = vmatpush1.bf16.msra.mxu0 0
        %453 = vmatprep.subr.bf16.mxu0 0
        %454 = vmatpush1.bf16.msra.mxu0 0
        %455 = vmatprep.mubr.bf16.mxu0 0
        %456 = vmatmul.mubr.bf16.gmra.mrb[0].mxu0 %v415
        %v457 = vpop.f32.mrb[0].mxu0
        %v458 = vadd.f32 %v390, %v457
        %v459 = vpop.f32.mrb[0].mxu0
        %v460 = vpop.f32.mrb[0].mxu0
        %v461 = vadd.f32 %v393, %v460
        %v462 = vpop.f32.mrb[0].mxu0
        %463 = vmatprep.mubr.bf16.mxu0 0
        %464 = vmatmul.mubr.bf16.gmra.mrb[0].mxu0 %v418
        %v465 = vpop.f32.mrb[0].mxu0
        %v466 = vadd.f32 %v398, %v465
        %v467 = vpop.f32.mrb[0].mxu0
        %v468 = vpop.f32.mrb[0].mxu0
        %v469 = vadd.f32 %v401, %v468
        %v470 = vpop.f32.mrb[0].mxu0
        %471 = vdwg.mxu0
        %v472 = vld [vmem:[#allocation10] sm:$0x1]
        %v474 = vlaneseq
        %v475 = vshrl.u32 %v474, 7
        %v476 = vsub.s32 0, %v475
        %v477 = vrot.slane %v472, %v476
        %v479 = vadd.f32 %v458, %v477
        %v480 = vadd.f32 %v461, %v477
        %v481 = vadd.f32 %v466, %v477
        %v482 = vadd.f32 %v469, %v477
        %vm483 = vcmp.ge.f32.partialorder %v479, 0.0
        %vm484 = vcmp.ge.f32.partialorder %v480, 0.0
        %vm485 = vcmp.ge.f32.partialorder %v481, 0.0
        %vm486 = vcmp.ge.f32.partialorder %v482, 0.0
        %v487 = vmul.f32 %v479, 0.2
        %v488 = vmul.f32 %v480, 0.2
        %v489 = vmul.f32 %v481, 0.2
        %v490 = vmul.f32 %v482, 0.2
        %v491 = vsel %vm483, %v479, %v487
        %v492 = vsel %vm484, %v480, %v488
        %v493 = vsel %vm485, %v481, %v489
        %v494 = vsel %vm486, %v482, %v490
        %v495 = vpack.c.bf16 %v492, %v491
        %v496 = vpack.c.bf16 %v494, %v493
        %v499 = vunpack.c.l.b16 %v495
        %v500 = vunpack.c.h.b16 %v495
        %v501 = vunpack.c.l.b16 %v496
        %v502 = vunpack.c.h.b16 %v496
        %v503 = vpack.c.b16 %v499, %v499
        %v504 = vpack.c.b16 %v500, %v500
        %v505 = vpack.c.b16 %v501, %v501
        %v506 = vpack.c.b16 %v502, %v502
        %vm511 = vcmask 257024
        %512 = vst.msk [vmem:[%s319] sm:$0xf] %vm511, %v503
        %513 = vst.msk [vmem:[%s319 + $0x4] sm:$0xf] %vm511, %v504
        %514 = vst.msk [vmem:[%s319 + $0x8] sm:$0xf] %vm511, %v505
        %515 = vst.msk [vmem:[%s319 + $0xc] sm:$0xf] %vm511, %v506
        %s516 = sand.u32 %s149, 1
        %s517 = scalar_lea.sflag [#allocation4], %s516
        %s518 = sand.u32 %s149, 1
        %s519 = smul.addr %s518, 16
        %s520 = scalar_lea.vmem [#allocation11], %s519
        // Predicated region
        $region61: #{tpu_custom_call.1} parent=39 // pred_check
          %p521 = pneg %p159
        $region62: #{tpu_custom_call.1} parent=39 // pred_check_branch
          %523 = sbr.rel (%p521) target = $region64
        $region63: #{tpu_custom_call.1} parent=39 // pred_region
          %s524 = smul.u32 4, %s26
          %s526 = ssub.s32 256, 256
          %527 = vsyncadd %s517, %s526
          %s528 = smul.addr %s524, 64
          %s529 = scalar_lea.hbm %s5, %s528
          %s530 = sshll.u32 %s520, 4
          %s531 = int_to_ptr.vmem [resolvable:$true] %s530
          %536 = dma.vmem_to_hbm [thread:$0]  %s531, 256, %s529, %s517, 64, 64, 4
        $region64: #{tpu_custom_call.1} parent=39 // pred_fallthru
          _
      $region40: #{tpu_custom_call.1} parent=5 // pred_fallthru
        _
      %p537 = scmp.le.s32.totalorder 2, %s21
      // Predicated region
      $region65: #{tpu_custom_call.1} parent=5 // pred_check
        %p538 = pneg %p537
      $region66: #{tpu_custom_call.1} parent=5 // pred_check_branch
        %540 = sbr.rel (%p538) target = $region68
      $region67: #{tpu_custom_call.1} parent=5 // pred_region
        %s541 = ssub.s32 %s21, 2
        // Predicated region
        $region69: #{tpu_custom_call.1} parent=67 // pred_check
          %p542 = pneg %p165
        $region70: #{tpu_custom_call.1} parent=67 // pred_check_branch
          %544 = sbr.rel (%p542) target = $region72
        $region71: #{tpu_custom_call.1} parent=67 // pred_region
          %s545 = sand.u32 %s150, 1
          %s546 = scalar_lea.sflag [#allocation4], %s545
          %s547 = sand.u32 %s150, 1
          %s548 = smul.addr %s547, 16
          %s549 = scalar_lea.vmem [#allocation11], %s548
          %550 = dma.done %s546, 256
        $region72: #{tpu_custom_call.1} parent=67 // pred_fallthru
          _
      $region68: #{tpu_custom_call.1} parent=5 // pred_fallthru
        _
    $region6: #{tpu_custom_call.1} parent=1 // loop_footer
      %s25 = sadd.s32 1, %s21
    $region7: #{tpu_custom_call.1} parent=1 // loop_footer_branch
      %20 = sbr.rel target = $region3
    $region8: #{tpu_custom_call.1} parent=1 // loop_exit
      _
    %551 = vsyncpa [#allocation3], 1
    %s552 = scalar_lea.sflag [#allocation3], 1
    %553 = vsyncpa %s552, 1
    %554 = vsyncpa [#allocation6], 1
    %s555 = scalar_lea.sflag [#allocation6], 1
    %556 = vsyncpa %s555, 1
    %557 = vsyncpa [#allocation9], 1
    %558 = vsyncpa [#allocation4], 1
    %s559 = scalar_lea.sflag [#allocation4], 1
    %560 = vsyncpa %s559, 1

</llo_original>
